<compile_context>
chip_gen: v7x
topology: tpu7x:2x2x1
jax: 0.10.0
libtpu: 0.0.40
codegen_flags: <defaults>
</compile_context>

<pallas_src>
import jax
import jax.numpy as jnp
from jax import lax
from jax.experimental import pallas as pl
from jax.experimental.pallas import tpu as pltpu

EPS = 1e-5  # nn.BatchNorm2d default


# -----------------------------------------------------------------------------
# Kernel
# -----------------------------------------------------------------------------
def _make_kernel(Nb, H, W, Cin, Cmid, Cout, has_shortcut, compute_dtype):
    Lin = W * Cin
    Lmid = W * Cmid
    Lout = W * Cout
    M = Nb * H

    def dy_taps(rows, L):
        # rows: (Nb, H, L) lane-dense image rows.  Returns (Nb*H, 3*L) =
        # [row h-1 | row h | row h+1] with per-image SAME-padding zero rows at the
        # top/bottom boundary.  Pure sublane shifts; no padded scratch buffer.
        zrow = jnp.zeros((Nb, 1, L), rows.dtype)
        up = jnp.concatenate([zrow, rows[:, : H - 1, :]], axis=1)   # holds source row h-1
        dn = jnp.concatenate([rows[:, 1:, :], zrow], axis=1)        # holds source row h+1
        return jnp.concatenate([up, rows, dn], axis=2).reshape(M, 3 * L)

    def kernel(x_ref, w1_ref, b1_ref, w2_ref, b2_ref, o_ref):
        xr = x_ref[...]                                             # (Nb, H, W*Cin), bf16
        # conv1 (+ shortcut conv, if present) as a single MXU dot over M = Nb*H rows.
        p1 = dy_taps(xr, Lin)                                       # (M, 3*W*Cin)
        r1 = jnp.dot(p1, w1_ref[...], preferred_element_type=jnp.float32)
        r1 = r1 + b1_ref[...]                                       # f32
        h1 = jnp.maximum(r1[:, :Lmid], 0.0)                         # conv1 -> BN1 -> ReLU
        if has_shortcut:
            idn = r1[:, Lmid:]                                      # shortcut conv -> BN
        else:
            # Identity residual (Cin == Cout): add the input block directly, f32 path.
            idn = xr.reshape(M, Lin).astype(jnp.float32)
        # conv2 as one MXU dot, still lane-dense.
        p2 = dy_taps(h1.astype(compute_dtype).reshape(Nb, H, Lmid), Lmid)
        r2 = jnp.dot(p2, w2_ref[...], preferred_element_type=jnp.float32)
        r2 = r2 + b2_ref[...] + idn
        out = jnp.maximum(r2, 0.0).astype(o_ref.dtype)              # final ReLU, cast to bf16
        o_ref[...] = out.reshape(Nb, H, Lout)                       # unmasked lane-dense store

    return kernel


# -----------------------------------------------------------------------------
# Wrapper-side weight preparation (pure layout plumbing, done once by XLA)
# -----------------------------------------------------------------------------
def _fold_bn(w_hwio, gamma, beta, mean, var):
    """Fold eval-mode BatchNorm into conv weight (HWIO) + per-channel bias."""
    scale = gamma / jnp.sqrt(var + EPS)
    return w_hwio * scale[None, None, None, :], beta - mean * scale


def _band_weight(w_hwio, W):
    """(3,3,Ci,Co) conv weight -> (3*W*Ci, W*Co) block-tridiagonal matrix so the SAME-padded
    3x3 conv over lane-dense (M, W*Ci) rows becomes one matmul (the three dy taps are
    concatenated along K by the kernel).  Row = dy*(W*Ci) + w_src*Ci + ci, col = w_dst*Co + co.
    The W-boundary zero padding is encoded by the band structure itself."""
    KH, KW, Ci, Co = w_hwio.shape
    src = jnp.arange(W)[:, None]                      # source column w'
    dst = jnp.arange(W)[None, :]                      # destination column w
    dx = src - dst + 1                                # tap index; valid in [0, KW)
    valid = ((dx >= 0) & (dx < KW)).astype(w_hwio.dtype)
    blk = w_hwio[:, jnp.clip(dx, 0, KW - 1), :, :]    # (KH, Wsrc, Wdst, Ci, Co)
    blk = blk * valid[None, :, :, None, None]
    blk = jnp.transpose(blk, (0, 1, 3, 2, 4))         # (KH, Wsrc, Ci, Wdst, Co)
    return blk.reshape(KH * W * Ci, W * Co)


def _pick_batch_tile(N, H):
    """Images per grid step: target M = Nb*H ~ 256 (fills the 256-row MXU on v6e/v7x),
    while keeping >= 2 grid steps when N >= 2 so v7x megacore shards the batch axis."""
    cap = max(1, 256 // max(H, 1))
    if N >= 2:
        cap = min(cap, N // 2)
    cap = max(1, min(cap, N))
    nb = 1
    for d in range(1, cap + 1):
        if N % d == 0:
            nb = d
    return nb


@jax.jit
def double_conv_pallas(x_nchw, params):
    N, Cin, H, W = x_nchw.shape
    Cmid = params["w1"].shape[-1]
    Cout = params["w2"].shape[-1]
    has_shortcut = "ws" in params
    if not has_shortcut and Cin != Cout:
        raise ValueError("identity residual requires in_channels == out_channels")

    w1f, b1f = _fold_bn(params["w1"], params["g1"], params["be1"], params["m1"], params["v1"])
    w2f, b2f = _fold_bn(params["w2"], params["g2"], params["be2"], params["m2"], params["v2"])

    cdt = jnp.bfloat16  # MXU input dtype; accumulation / bias / residual stay f32
    if has_shortcut:
        wsf, bsf = _fold_bn(params["ws"], params["gs"], params["bes"], params["ms"], params["vs"])
        w_big1 = jnp.concatenate([_band_weight(w1f, W), _band_weight(wsf, W)], axis=1).astype(cdt)
        b_big1 = jnp.concatenate([jnp.tile(b1f, W), jnp.tile(bsf, W)]).reshape(1, -1).astype(jnp.float32)
    else:
        # Identity residual is added in-kernel from the input block -- no synthetic band.
        w_big1 = _band_weight(w1f, W).astype(cdt)
        b_big1 = jnp.tile(b1f, W).reshape(1, -1).astype(jnp.float32)
    w_big2 = _band_weight(w2f, W).astype(cdt)
    b_big2 = jnp.tile(b2f, W).reshape(1, -1).astype(jnp.float32)

    # lane-dense activation layout: NCHW -> NHWC -> (N, H, W*Cin)
    x_rows = jnp.transpose(x_nchw, (0, 2, 3, 1)).reshape(N, H, W * Cin).astype(cdt)

    Nb = _pick_batch_tile(N, H)
    kernel = _make_kernel(Nb, H, W, Cin, Cmid, Cout, has_shortcut, cdt)

    const_spec = lambda shape: pl.BlockSpec(shape, lambda n: (0, 0),
                                            pipeline_mode=pl.Buffered(1))  # single-buffer weights

    out_rows = pl.pallas_call(
        kernel,
        out_shape=jax.ShapeDtypeStruct((N, H, W * Cout), jnp.bfloat16),
        grid_spec=pltpu.PrefetchScalarGridSpec(
            num_scalar_prefetch=0,
            grid=(N // Nb,),
            in_specs=[
                pl.BlockSpec((Nb, H, W * Cin), lambda n: (n, 0, 0)),
                const_spec(w_big1.shape),
                const_spec(b_big1.shape),
                const_spec(w_big2.shape),
                const_spec(b_big2.shape),
            ],
            out_specs=pl.BlockSpec((Nb, H, W * Cout), lambda n: (n, 0, 0)),
        ),
        compiler_params=pltpu.CompilerParams(dimension_semantics=("parallel",)),
    )(x_rows, w_big1, b_big1, w_big2, b_big2)

    # Undo the lane-dense packing next to the transpose back to NCHW (free layout plumbing).
    return jnp.transpose(out_rows.reshape(N, H, W, Cout), (0, 3, 1, 2))


# -----------------------------------------------------------------------------
# Pure-JAX f32 reference of the PyTorch forward (eval-mode BN)
# -----------------------------------------------------------------------------
def _conv_bn_ref(x_nhwc, w, gamma, beta, mean, var):
    y = lax.conv_general_dilated(x_nhwc, w, (1, 1), "SAME",
                                 dimension_numbers=("NHWC", "HWIO", "NHWC"))
    return gamma * (y - mean) / jnp.sqrt(var + EPS) + beta


def double_conv_reference(x_nchw, p):
    x = jnp.transpose(x_nchw, (0, 2, 3, 1)).astype(jnp.float32)
    h = jnp.maximum(_conv_bn_ref(x, p["w1"], p["g1"], p["be1"], p["m1"], p["v1"]), 0.0)
    h = _conv_bn_ref(h, p["w2"], p["g2"], p["be2"], p["m2"], p["v2"])
    idn = _conv_bn_ref(x, p["ws"], p["gs"], p["bes"], p["ms"], p["vs"]) if "ws" in p else x
    return jnp.transpose(jnp.maximum(h + idn, 0.0), (0, 3, 1, 2))


if __name__ == "__main__":
    key = jax.random.PRNGKey(0)

    def bn_params(k, c):
        k1, k2, k3 = jax.random.split(k, 3)
        return (1.0 + 0.1 * jax.random.normal(k1, (c,), jnp.float32),
                0.05 * jax.random.normal(k2, (c,), jnp.float32),
                0.02 * jax.random.normal(k3, (c,), jnp.float32),
                jnp.ones((c,), jnp.float32))

    def make_params(k, Cin, Cmid, Cout, with_shortcut):
        ks = jax.random.split(k, 6)
        w1 = 0.1 * jax.random.normal(ks[0], (3, 3, Cin, Cmid), jnp.float32)
        w2 = 0.1 * jax.random.normal(ks[1], (3, 3, Cmid, Cout), jnp.float32)
        g1, be1, m1, v1 = bn_params(ks[2], Cmid)
        g2, be2, m2, v2 = bn_params(ks[3], Cout)
        p = dict(w1=w1, g1=g1, be1=be1, m1=m1, v1=v1,
                 w2=w2, g2=g2, be2=be2, m2=m2, v2=v2)
        if with_shortcut:
            ws = 0.1 * jax.random.normal(ks[4], (3, 3, Cin, Cout), jnp.float32)
            gs, bes, ms, vs = bn_params(ks[5], Cout)
            p.update(ws=ws, gs=gs, bes=bes, ms=ms, vs=vs)
        return p

    N, H, W = 2, 16, 16
    k_a, k_b, k_xa, k_xb = jax.random.split(key, 4)

    # Config A: Cin != Cout -> conv shortcut branch present (as in the PyTorch module).
    Cin_a, Cout_a = 4, 8
    params_a = make_params(k_a, Cin_a, Cout_a, Cout_a, with_shortcut=True)
    x_a = jax.random.normal(k_xa, (N, Cin_a, H, W), jnp.float32)   # NCHW like PyTorch
    out_a = jax.block_until_ready(double_conv_pallas(x_a, params_a))
    ref_a = double_conv_reference(x_a, params_a)
    assert out_a.shape == (N, Cout_a, H, W)
    # bf16 MXU inputs + bf16 output with f32 accumulation -> loosened tolerance vs f32 ref.
    assert jnp.allclose(out_a.astype(jnp.float32), ref_a, atol=5e-2, rtol=5e-2), \
        float(jnp.max(jnp.abs(out_a.astype(jnp.float32) - ref_a)))

    # Config B: Cin == Cout -> identity residual (no shortcut conv), added in-kernel in f32.
    Cin_b = Cout_b = 8
    params_b = make_params(k_b, Cin_b, Cout_b, Cout_b, with_shortcut=False)
    x_b = jax.random.normal(k_xb, (N, Cin_b, H, W), jnp.float32)
    out_b = jax.block_until_ready(double_conv_pallas(x_b, params_b))
    ref_b = double_conv_reference(x_b, params_b)
    assert out_b.shape == (N, Cout_b, H, W)
    assert jnp.allclose(out_b.astype(jnp.float32), ref_b, atol=5e-2, rtol=5e-2), \
        float(jnp.max(jnp.abs(out_b.astype(jnp.float32) - ref_b)))

    print("KERNEL_OK")
</pallas_src>

<mosaic_0001>
module attributes {stable_mosaic.version = 11 : i64} {
  func.func @kernel(%arg0: i32, %arg1: memref<1x16x64xbf16, #tpu.memory_space<vmem>>, %arg2: memref<192x256xbf16, #tpu.memory_space<vmem>>, %arg3: memref<1x256xf32, #tpu.memory_space<vmem>>, %arg4: memref<384x128xbf16, #tpu.memory_space<vmem>>, %arg5: memref<1x128xf32, #tpu.memory_space<vmem>>, %arg6: memref<1x16x128xbf16, #tpu.memory_space<vmem>>) attributes {dimension_semantics = [#tpu.dimension_semantics<parallel>], iteration_bounds = array<i64: 2>, scalar_prefetch = 0 : i64, scratch_operands = 0 : i64, tpu.core_type = #tpu.core_type<tc>, window_params = [{transform_indices = @transform_0, window_bounds = array<i64: 1, 16, 64>}, {pipeline_mode = #tpu.pipeline_mode<synchronous>, transform_indices = @transform_1, window_bounds = array<i64: 192, 256>}, {pipeline_mode = #tpu.pipeline_mode<synchronous>, transform_indices = @transform_2, window_bounds = array<i64: 1, 256>}, {pipeline_mode = #tpu.pipeline_mode<synchronous>, transform_indices = @transform_3, window_bounds = array<i64: 384, 128>}, {pipeline_mode = #tpu.pipeline_mode<synchronous>, transform_indices = @transform_4, window_bounds = array<i64: 1, 128>}, {transform_indices = @transform_5, window_bounds = array<i64: 1, 16, 128>}]} {
    %c0 = arith.constant 0 : index
    %c0_0 = arith.constant 0 : index
    %c0_1 = arith.constant 0 : index
    %0 = vector.load %arg1[%c0, %c0_0, %c0_1] : memref<1x16x64xbf16, #tpu.memory_space<vmem>>, vector<1x16x64xbf16>
    %cst = arith.constant 0.000000e+00 : bf16
    %1 = vector.broadcast %cst : bf16 to vector<1x1x64xbf16>
    %2 = vector.extract_strided_slice %0 {offsets = [0, 0, 0], sizes = [1, 15, 64], strides = [1, 1, 1]} : vector<1x16x64xbf16> to vector<1x15x64xbf16>
    %3 = tpu.concatenate %1, %2 in 1 : vector<1x1x64xbf16>, vector<1x15x64xbf16> -> vector<1x16x64xbf16>
    %4 = vector.extract_strided_slice %0 {offsets = [0, 1, 0], sizes = [1, 15, 64], strides = [1, 1, 1]} : vector<1x16x64xbf16> to vector<1x15x64xbf16>
    %5 = tpu.concatenate %4, %1 in 1 : vector<1x15x64xbf16>, vector<1x1x64xbf16> -> vector<1x16x64xbf16>
    %6 = tpu.concatenate %3, %0, %5 in 2 : vector<1x16x64xbf16>, vector<1x16x64xbf16>, vector<1x16x64xbf16> -> vector<1x16x192xbf16>
    %7 = vector.shape_cast %6 : vector<1x16x192xbf16> to vector<16x192xbf16>
    %c0_2 = arith.constant 0 : index
    %c0_3 = arith.constant 0 : index
    %8 = vector.load %arg2[%c0_2, %c0_3] : memref<192x256xbf16, #tpu.memory_space<vmem>>, vector<192x256xbf16>
    %cst_4 = arith.constant dense<0.000000e+00> : vector<16x256xf32>
    %9 = tpu.matmul %7, %8, %cst_4 {dimension_numbers = #tpu.dot_dimension_numbers<[1], [0], [0], [1], [0, 0, 1, 1], [], []>} : vector<16x192xbf16>, vector<192x256xbf16>, vector<16x256xf32> -> vector<16x256xf32>
    %c0_5 = arith.constant 0 : index
    %c0_6 = arith.constant 0 : index
    %10 = vector.load %arg3[%c0_5, %c0_6] : memref<1x256xf32, #tpu.memory_space<vmem>>, vector<1x256xf32>
    %11 = vector.broadcast %10 : vector<1x256xf32> to vector<16x256xf32>
    %12 = arith.addf %9, %11 : vector<16x256xf32>
    %13 = vector.extract_strided_slice %12 {offsets = [0, 0], sizes = [16, 128], strides = [1, 1]} : vector<16x256xf32> to vector<16x128xf32>
    %cst_7 = arith.constant 0.000000e+00 : f32
    %14 = vector.broadcast %cst_7 : f32 to vector<16x128xf32>
    %15 = arith.maximumf %13, %14 : vector<16x128xf32>
    %16 = vector.extract_strided_slice %12 {offsets = [0, 128], sizes = [16, 128], strides = [1, 1]} : vector<16x256xf32> to vector<16x128xf32>
    %17 = arith.truncf %15 : vector<16x128xf32> to vector<16x128xbf16>
    %18 = vector.shape_cast %17 : vector<16x128xbf16> to vector<1x16x128xbf16>
    %cst_8 = arith.constant 0.000000e+00 : bf16
    %19 = vector.broadcast %cst_8 : bf16 to vector<1x1x128xbf16>
    %20 = vector.extract_strided_slice %18 {offsets = [0, 0, 0], sizes = [1, 15, 128], strides = [1, 1, 1]} : vector<1x16x128xbf16> to vector<1x15x128xbf16>
    %21 = tpu.concatenate %19, %20 in 1 : vector<1x1x128xbf16>, vector<1x15x128xbf16> -> vector<1x16x128xbf16>
    %22 = vector.extract_strided_slice %18 {offsets = [0, 1, 0], sizes = [1, 15, 128], strides = [1, 1, 1]} : vector<1x16x128xbf16> to vector<1x15x128xbf16>
    %23 = tpu.concatenate %22, %19 in 1 : vector<1x15x128xbf16>, vector<1x1x128xbf16> -> vector<1x16x128xbf16>
    %24 = tpu.concatenate %21, %18, %23 in 2 : vector<1x16x128xbf16>, vector<1x16x128xbf16>, vector<1x16x128xbf16> -> vector<1x16x384xbf16>
    %25 = vector.shape_cast %24 : vector<1x16x384xbf16> to vector<16x384xbf16>
    %c0_9 = arith.constant 0 : index
    %c0_10 = arith.constant 0 : index
    %26 = vector.load %arg4[%c0_9, %c0_10] : memref<384x128xbf16, #tpu.memory_space<vmem>>, vector<384x128xbf16>
    %cst_11 = arith.constant dense<0.000000e+00> : vector<16x128xf32>
    %27 = tpu.matmul %25, %26, %cst_11 {dimension_numbers = #tpu.dot_dimension_numbers<[1], [0], [0], [1], [0, 0, 1, 1], [], []>} : vector<16x384xbf16>, vector<384x128xbf16>, vector<16x128xf32> -> vector<16x128xf32>
    %c0_12 = arith.constant 0 : index
    %c0_13 = arith.constant 0 : index
    %28 = vector.load %arg5[%c0_12, %c0_13] : memref<1x128xf32, #tpu.memory_space<vmem>>, vector<1x128xf32>
    %29 = vector.broadcast %28 : vector<1x128xf32> to vector<16x128xf32>
    %30 = arith.addf %27, %29 : vector<16x128xf32>
    %31 = arith.addf %30, %16 : vector<16x128xf32>
    %cst_14 = arith.constant 0.000000e+00 : f32
    %32 = vector.broadcast %cst_14 : f32 to vector<16x128xf32>
    %33 = arith.maximumf %31, %32 : vector<16x128xf32>
    %34 = arith.truncf %33 : vector<16x128xf32> to vector<16x128xbf16>
    %35 = vector.shape_cast %34 : vector<16x128xbf16> to vector<1x16x128xbf16>
    %c0_15 = arith.constant 0 : index
    %c0_16 = arith.constant 0 : index
    %c0_17 = arith.constant 0 : index
    %36 = vector.load %arg6[%c0_15, %c0_16, %c0_17] : memref<1x16x128xbf16, #tpu.memory_space<vmem>>, vector<1x16x128xbf16>
    tpu.vector_store %arg6[%c0_15, %c0_16, %c0_17], %35 {strides = array<i32>} : memref<1x16x128xbf16, #tpu.memory_space<vmem>>, vector<1x16x128xbf16>,
    return
  }
  func.func @transform_0(%arg0: i32) -> (i32, i32, i32) {
    %c0_i32 = arith.constant 0 : i32
    %c0_i32_0 = arith.constant 0 : i32
    %c0_i32_1 = arith.constant 0 : i32
    return %arg0, %c0_i32, %c0_i32_0 : i32, i32, i32
  }
  func.func @transform_1(%arg0: i32) -> (i32, i32) {
    %c0_i32 = arith.constant 0 : i32
    %c0_i32_0 = arith.constant 0 : i32
    %c0_i32_1 = arith.constant 0 : i32
    return %c0_i32, %c0_i32_0 : i32, i32
  }
  func.func @transform_2(%arg0: i32) -> (i32, i32) {
    %c0_i32 = arith.constant 0 : i32
    %c0_i32_0 = arith.constant 0 : i32
    %c0_i32_1 = arith.constant 0 : i32
    return %c0_i32, %c0_i32_0 : i32, i32
  }
  func.func @transform_3(%arg0: i32) -> (i32, i32) {
    %c0_i32 = arith.constant 0 : i32
    %c0_i32_0 = arith.constant 0 : i32
    %c0_i32_1 = arith.constant 0 : i32
    return %c0_i32, %c0_i32_0 : i32, i32
  }
  func.func @transform_4(%arg0: i32) -> (i32, i32) {
    %c0_i32 = arith.constant 0 : i32
    %c0_i32_0 = arith.constant 0 : i32
    %c0_i32_1 = arith.constant 0 : i32
    return %c0_i32, %c0_i32_0 : i32, i32
  }
  func.func @transform_5(%arg0: i32) -> (i32, i32, i32) {
    %c0_i32 = arith.constant 0 : i32
    %c0_i32_0 = arith.constant 0 : i32
    %c0_i32_1 = arith.constant 0 : i32
    return %arg0, %c0_i32, %c0_i32_0 : i32, i32, i32
  }
}

</mosaic_0001>

<llo_original>
// kernel: tile.18
$region0: #{tile.18}
  #allocation0 [shape = 's32[1]{0}', space=sflag, size = 0x4, scoped, tag = 'scoped memory for tile.18']
  %s0 = inlined_call_operand.vmem [shape: f32[8], index: 0, kind: input, shape index: {}]
  %s1 = inlined_call_operand.vmem [shape: f32[16,8], index: 1, kind: output, shape index: {}]
  // Predicated region
  $region2: #{tile.18} parent=0 // pred_check
    _
  $region3: #{tile.18} parent=0 // pred_check_branch
    %3 = sbr.rel (0) target = $region5
  $region4: #{tile.18} parent=0 // pred_region
    _
  $region5: #{tile.18} parent=0 // pred_fallthru
    _
  %v4 = vld [vmem:[%s0] ss:$0 sm:$0xff]
  %5 = vst [vmem:[%s1] sm:$0xff] %v4
  %s6 = scalar_lea.vmem %s1, 8
  %7 = vst [vmem:[%s6] sm:$0xff] %v4

// kernel: tile.19
$region0: #{tile.19}
  %s0 = inlined_call_operand.vmem [shape: f32[16,8], index: 0, kind: input, shape index: {}]
  %s1 = inlined_call_operand.vmem [shape: f32[128], index: 1, kind: output, shape index: {}]
  $region1: #{tile.19} parent=0
    #allocation0 [shape = 'u8[4096]{0}', space=vmem, size = 0x1000, scoped, tag = 'scoped mem for output reshape']
    %v2 = vld [vmem:[%s0] sm:$0x1]
    %vm3 = vcmask 64512
    %4 = vst.msk [vmem:[#allocation0] sm:$0x1] %vm3, %v2
    %s5 = scalar_lea.vmem %s0, 15
    %v6 = vld [vmem:[%s5] sm:$0x1]
    %7 = vrot.lane.b32.xlu0 %v6, 120
    %v8 = vpop.permute.xlu0 %7
    %vm9 = vcmask 1048512
    %10 = vst.msk [vmem:[#allocation0] sm:$0x1] %vm9, %v8
    %s11 = scalar_lea.vmem %s0, 14
    %v12 = vld [vmem:[%s11] sm:$0x1]
    %13 = vrot.lane.b32.xlu0 %v12, 112
    %v14 = vpop.permute.xlu0 %13
    %vm15 = vcmask 982912
    %16 = vst.msk [vmem:[#allocation0] sm:$0x1] %vm15, %v14
    %s17 = scalar_lea.vmem %s0, 13
    %v18 = vld [vmem:[%s17] sm:$0x1]
    %19 = vrot.lane.b32.xlu0 %v18, 104
    %v20 = vpop.permute.xlu0 %19
    %vm21 = vcmask 917312
    %22 = vst.msk [vmem:[#allocation0] sm:$0x1] %vm21, %v20
    %s23 = scalar_lea.vmem %s0, 12
    %v24 = vld [vmem:[%s23] sm:$0x1]
    %25 = vrot.lane.b32.xlu0 %v24, 96
    %v26 = vpop.permute.xlu0 %25
    %vm27 = vcmask 851712
    %28 = vst.msk [vmem:[#allocation0] sm:$0x1] %vm27, %v26
    %s29 = scalar_lea.vmem %s0, 11
    %v30 = vld [vmem:[%s29] sm:$0x1]
    %31 = vrot.lane.b32.xlu0 %v30, 88
    %v32 = vpop.permute.xlu0 %31
    %vm33 = vcmask 786112
    %34 = vst.msk [vmem:[#allocation0] sm:$0x1] %vm33, %v32
    %s35 = scalar_lea.vmem %s0, 10
    %v36 = vld [vmem:[%s35] sm:$0x1]
    %37 = vrot.lane.b32.xlu0 %v36, 80
    %v38 = vpop.permute.xlu0 %37
    %vm39 = vcmask 720512
    %40 = vst.msk [vmem:[#allocation0] sm:$0x1] %vm39, %v38
    %s41 = scalar_lea.vmem %s0, 9
    %v42 = vld [vmem:[%s41] sm:$0x1]
    %43 = vrot.lane.b32.xlu0 %v42, 72
    %v44 = vpop.permute.xlu0 %43
    %vm45 = vcmask 654912
    %46 = vst.msk [vmem:[#allocation0] sm:$0x1] %vm45, %v44
    %s47 = scalar_lea.vmem %s0, 8
    %v48 = vld [vmem:[%s47] sm:$0x1]
    %49 = vrot.lane.b32.xlu0 %v48, 64
    %v50 = vpop.permute.xlu0 %49
    %vm51 = vcmask 589312
    %52 = vst.msk [vmem:[#allocation0] sm:$0x1] %vm51, %v50
    %s53 = scalar_lea.vmem %s0, 7
    %v54 = vld [vmem:[%s53] sm:$0x1]
    %55 = vrot.lane.b32.xlu0 %v54, 56
    %v56 = vpop.permute.xlu0 %55
    %vm57 = vcmask 523712
    %58 = vst.msk [vmem:[#allocation0] sm:$0x1] %vm57, %v56
    %s59 = scalar_lea.vmem %s0, 6
    %v60 = vld [vmem:[%s59] sm:$0x1]
    %61 = vrot.lane.b32.xlu0 %v60, 48
    %v62 = vpop.permute.xlu0 %61
    %vm63 = vcmask 458112
    %64 = vst.msk [vmem:[#allocation0] sm:$0x1] %vm63, %v62
    %s65 = scalar_lea.vmem %s0, 5
    %v66 = vld [vmem:[%s65] sm:$0x1]
    %67 = vrot.lane.b32.xlu0 %v66, 40
    %v68 = vpop.permute.xlu0 %67
    %vm69 = vcmask 392512
    %70 = vst.msk [vmem:[#allocation0] sm:$0x1] %vm69, %v68
    %s71 = scalar_lea.vmem %s0, 4
    %v72 = vld [vmem:[%s71] sm:$0x1]
    %73 = vrot.lane.b32.xlu0 %v72, 32
    %v74 = vpop.permute.xlu0 %73
    %vm75 = vcmask 326912
    %76 = vst.msk [vmem:[#allocation0] sm:$0x1] %vm75, %v74
    %s77 = scalar_lea.vmem %s0, 3
    %v78 = vld [vmem:[%s77] sm:$0x1]
    %79 = vrot.lane.b32.xlu0 %v78, 24
    %v80 = vpop.permute.xlu0 %79
    %vm81 = vcmask 261312
    %82 = vst.msk [vmem:[#allocation0] sm:$0x1] %vm81, %v80
    %s83 = scalar_lea.vmem %s0, 2
    %v84 = vld [vmem:[%s83] sm:$0x1]
    %85 = vrot.lane.b32.xlu0 %v84, 16
    %v86 = vpop.permute.xlu0 %85
    %vm87 = vcmask 195712
    %88 = vst.msk [vmem:[#allocation0] sm:$0x1] %vm87, %v86
    %s89 = scalar_lea.vmem %s0, 1
    %v90 = vld [vmem:[%s89] sm:$0x1]
    %91 = vrot.lane.b32.xlu0 %v90, 8
    %v92 = vpop.permute.xlu0 %91
    %vm93 = vcmask 130112
    %94 = vst.msk [vmem:[#allocation0] sm:$0x1] %vm93, %v92
    %s96 = sshllo.u32 0, 1
    %v98 = vld [vmem:[#allocation0] sm:%s96]
    %s99 = sshllo.u32 0, 1
    %100 = vst [vmem:[%s1] sm:%s99] %v98

// kernel: tile.29
$region0: #{tile.29}
  %s0 = inlined_call_operand.vmem [shape: f32[16,8], index: 0, kind: input, shape index: {}]
  %s1 = inlined_call_operand.vmem [shape: f32[1,128], index: 1, kind: output, shape index: {}]
  $region1: #{tile.29} parent=0
    #allocation0 [shape = 'u8[4096]{0}', space=vmem, size = 0x1000, scoped, tag = 'scoped mem for output reshape']
    %v2 = vld [vmem:[%s0] sm:$0x1]
    %vm3 = vcmask 64512
    %4 = vst.msk [vmem:[#allocation0] sm:$0x1] %vm3, %v2
    %s5 = scalar_lea.vmem %s0, 15
    %v6 = vld [vmem:[%s5] sm:$0x1]
    %7 = vrot.lane.b32.xlu0 %v6, 120
    %v8 = vpop.permute.xlu0 %7
    %vm9 = vcmask 1048512
    %10 = vst.msk [vmem:[#allocation0] sm:$0x1] %vm9, %v8
    %s11 = scalar_lea.vmem %s0, 14
    %v12 = vld [vmem:[%s11] sm:$0x1]
    %13 = vrot.lane.b32.xlu0 %v12, 112
    %v14 = vpop.permute.xlu0 %13
    %vm15 = vcmask 982912
    %16 = vst.msk [vmem:[#allocation0] sm:$0x1] %vm15, %v14
    %s17 = scalar_lea.vmem %s0, 13
    %v18 = vld [vmem:[%s17] sm:$0x1]
    %19 = vrot.lane.b32.xlu0 %v18, 104
    %v20 = vpop.permute.xlu0 %19
    %vm21 = vcmask 917312
    %22 = vst.msk [vmem:[#allocation0] sm:$0x1] %vm21, %v20
    %s23 = scalar_lea.vmem %s0, 12
    %v24 = vld [vmem:[%s23] sm:$0x1]
    %25 = vrot.lane.b32.xlu0 %v24, 96
    %v26 = vpop.permute.xlu0 %25
    %vm27 = vcmask 851712
    %28 = vst.msk [vmem:[#allocation0] sm:$0x1] %vm27, %v26
    %s29 = scalar_lea.vmem %s0, 11
    %v30 = vld [vmem:[%s29] sm:$0x1]
    %31 = vrot.lane.b32.xlu0 %v30, 88
    %v32 = vpop.permute.xlu0 %31
    %vm33 = vcmask 786112
    %34 = vst.msk [vmem:[#allocation0] sm:$0x1] %vm33, %v32
    %s35 = scalar_lea.vmem %s0, 10
    %v36 = vld [vmem:[%s35] sm:$0x1]
    %37 = vrot.lane.b32.xlu0 %v36, 80
    %v38 = vpop.permute.xlu0 %37
    %vm39 = vcmask 720512
    %40 = vst.msk [vmem:[#allocation0] sm:$0x1] %vm39, %v38
    %s41 = scalar_lea.vmem %s0, 9
    %v42 = vld [vmem:[%s41] sm:$0x1]
    %43 = vrot.lane.b32.xlu0 %v42, 72
    %v44 = vpop.permute.xlu0 %43
    %vm45 = vcmask 654912
    %46 = vst.msk [vmem:[#allocation0] sm:$0x1] %vm45, %v44
    %s47 = scalar_lea.vmem %s0, 8
    %v48 = vld [vmem:[%s47] sm:$0x1]
    %49 = vrot.lane.b32.xlu0 %v48, 64
    %v50 = vpop.permute.xlu0 %49
    %vm51 = vcmask 589312
    %52 = vst.msk [vmem:[#allocation0] sm:$0x1] %vm51, %v50
    %s53 = scalar_lea.vmem %s0, 7
    %v54 = vld [vmem:[%s53] sm:$0x1]
    %55 = vrot.lane.b32.xlu0 %v54, 56
    %v56 = vpop.permute.xlu0 %55
    %vm57 = vcmask 523712
    %58 = vst.msk [vmem:[#allocation0] sm:$0x1] %vm57, %v56
    %s59 = scalar_lea.vmem %s0, 6
    %v60 = vld [vmem:[%s59] sm:$0x1]
    %61 = vrot.lane.b32.xlu0 %v60, 48
    %v62 = vpop.permute.xlu0 %61
    %vm63 = vcmask 458112
    %64 = vst.msk [vmem:[#allocation0] sm:$0x1] %vm63, %v62
    %s65 = scalar_lea.vmem %s0, 5
    %v66 = vld [vmem:[%s65] sm:$0x1]
    %67 = vrot.lane.b32.xlu0 %v66, 40
    %v68 = vpop.permute.xlu0 %67
    %vm69 = vcmask 392512
    %70 = vst.msk [vmem:[#allocation0] sm:$0x1] %vm69, %v68
    %s71 = scalar_lea.vmem %s0, 4
    %v72 = vld [vmem:[%s71] sm:$0x1]
    %73 = vrot.lane.b32.xlu0 %v72, 32
    %v74 = vpop.permute.xlu0 %73
    %vm75 = vcmask 326912
    %76 = vst.msk [vmem:[#allocation0] sm:$0x1] %vm75, %v74
    %s77 = scalar_lea.vmem %s0, 3
    %v78 = vld [vmem:[%s77] sm:$0x1]
    %79 = vrot.lane.b32.xlu0 %v78, 24
    %v80 = vpop.permute.xlu0 %79
    %vm81 = vcmask 261312
    %82 = vst.msk [vmem:[#allocation0] sm:$0x1] %vm81, %v80
    %s83 = scalar_lea.vmem %s0, 2
    %v84 = vld [vmem:[%s83] sm:$0x1]
    %85 = vrot.lane.b32.xlu0 %v84, 16
    %v86 = vpop.permute.xlu0 %85
    %vm87 = vcmask 195712
    %88 = vst.msk [vmem:[#allocation0] sm:$0x1] %vm87, %v86
    %s89 = scalar_lea.vmem %s0, 1
    %v90 = vld [vmem:[%s89] sm:$0x1]
    %91 = vrot.lane.b32.xlu0 %v90, 8
    %v92 = vpop.permute.xlu0 %91
    %vm93 = vcmask 130112
    %94 = vst.msk [vmem:[#allocation0] sm:$0x1] %vm93, %v92
    %s96 = sshllo.u32 0, 1
    %v98 = vld [vmem:[#allocation0] sm:%s96]
    %s99 = sshllo.u32 0, 1
    %100 = vst [vmem:[%s1] sm:%s99] %v98

// kernel: double_conv_pallas.1
$region0: #{double_conv_pallas.1}
  #allocation0 [shape = 'u32[]', space=smem, size = 0x4, offset = 0x4, fixed_abs, tag = 'smem constant byte address 0x4 - core index']
  #allocation1 [shape = 'u32[144,128]{1,0:T(1,128)}', space=vmem, size = 0x12000, scoped, tag = 'internal scratch']
  %s0 = inlined_call_operand.vmem [shape: bf16[2,16,64], index: 0, kind: input, shape index: {}]
  %s1 = inlined_call_operand.vmem [shape: bf16[192,256], index: 1, kind: input, shape index: {}]
  %s2 = inlined_call_operand.vmem [shape: f32[1,256], index: 2, kind: input, shape index: {}]
  %s3 = inlined_call_operand.vmem [shape: bf16[384,128], index: 3, kind: input, shape index: {}]
  %s4 = inlined_call_operand.vmem [shape: f32[1,128], index: 4, kind: input, shape index: {}]
  %s5 = inlined_call_operand.vmem [shape: bf16[2,16,128], index: 5, kind: output, shape index: {}]
  %s6 = sld [smem:[#allocation0]]
  $region53: #{double_conv_pallas.1} parent=0
    _
  %s8 = ssub.s32 1, %s6
  %s9 = scalar_select 0, %s8, %s6
  loop: start=0, step=1, limit=4
  $region2: #{double_conv_pallas.1} parent=0 // loop_pre_header
    _
  $region3: #{double_conv_pallas.1} parent=0 // loop_header
    %s11 = sphi 0, %s15
    %p12 = scmp.ge.s32.totalorder %s11, 4
    %s21 = sphi 0, %s23
    %s24 = sphi 0, %s21
    %s25 = sphi 0, %s24
    %s41 = sphi 0, %s25
    %s45 = sphi 0, %s45
    %s47 = sphi 0, %s45
    %s48 = sphi 0, %s47
    %s62 = sphi 0, %s48
    %s66 = sphi 0, %s66
    %s68 = sphi 0, %s66
    %s69 = sphi 0, %s68
    %s83 = sphi 0, %s69
    %s87 = sphi 0, %s87
    %s89 = sphi 0, %s87
    %s90 = sphi 0, %s89
    %s104 = sphi 0, %s90
    %s108 = sphi 0, %s108
    %s110 = sphi 0, %s108
    %s111 = sphi 0, %s110
    %s125 = sphi 0, %s111
    %s131 = sphi 0, %s133
    %s134 = sphi 0, %s131
    %s135 = sphi 0, %s134
    %s151 = sphi 0, %s135
  $region4: #{double_conv_pallas.1} parent=0 // loop_header_branch
    %14 = sbr.rel (%p12) target = $region8
  $region5: #{double_conv_pallas.1} parent=0 // loop_body
    %s16 = ssub.s32 %s11, 1
    %s17 = ssub.s32 %s11, 2
    %s18 = sadd.s32 %s11, 1
    %s19 = ssub.s32 %s11, %s18
    %p20 = scmp.eq.s32.totalorder %s19, 0
    %s22 = sadd.s32 %s21, 1
    %s23 = scalar_select %p20, %s21, %s22
    %p26 = pneg %p20
    %p27 = scmp.eq.s32.totalorder %s11, 1
    %p28 = por %p26, %p27
    %p29 = scmp.ne.s32.totalorder %s21, %s24
    %p30 = scmp.eq.s32.totalorder %s11, 0
    %p31 = por %p29, %p30
    %p32 = scmp.ne.s32.totalorder %s21, %s24
    %p33 = scmp.eq.s32.totalorder %s16, 1
    %p34 = por %p32, %p33
    %p35 = scmp.ne.s32.totalorder %s24, %s25
    %p36 = scmp.eq.s32.totalorder %s16, 0
    %p37 = por %p35, %p36
    %p38 = scmp.ne.s32.totalorder %s24, %s25
    %p39 = scmp.eq.s32.totalorder %s17, 1
    %p40 = por %p38, %p39
    %p42 = scmp.ne.s32.totalorder %s25, %s41
    %p43 = scmp.eq.s32.totalorder %s17, 0
    %p44 = por %p42, %p43
    %s46 = sadd.s32 %s45, 1
    %p49 = scmp.eq.s32.totalorder %s11, 1
    %p50 = scmp.ne.s32.totalorder %s45, %s47
    %p51 = scmp.eq.s32.totalorder %s11, 0
    %p52 = por %p50, %p51
    %p53 = scmp.ne.s32.totalorder %s45, %s47
    %p54 = scmp.eq.s32.totalorder %s16, 1
    %p55 = por %p53, %p54
    %p56 = scmp.ne.s32.totalorder %s47, %s48
    %p57 = scmp.eq.s32.totalorder %s16, 0
    %p58 = por %p56, %p57
    %p59 = scmp.ne.s32.totalorder %s47, %s48
    %p60 = scmp.eq.s32.totalorder %s17, 1
    %p61 = por %p59, %p60
    %p63 = scmp.ne.s32.totalorder %s48, %s62
    %p64 = scmp.eq.s32.totalorder %s17, 0
    %p65 = por %p63, %p64
    %s67 = sadd.s32 %s66, 1
    %p70 = scmp.eq.s32.totalorder %s11, 1
    %p71 = scmp.ne.s32.totalorder %s66, %s68
    %p72 = scmp.eq.s32.totalorder %s11, 0
    %p73 = por %p71, %p72
    %p74 = scmp.ne.s32.totalorder %s66, %s68
    %p75 = scmp.eq.s32.totalorder %s16, 1
    %p76 = por %p74, %p75
    %p77 = scmp.ne.s32.totalorder %s68, %s69
    %p78 = scmp.eq.s32.totalorder %s16, 0
    %p79 = por %p77, %p78
    %p80 = scmp.ne.s32.totalorder %s68, %s69
    %p81 = scmp.eq.s32.totalorder %s17, 1
    %p82 = por %p80, %p81
    %p84 = scmp.ne.s32.totalorder %s69, %s83
    %p85 = scmp.eq.s32.totalorder %s17, 0
    %p86 = por %p84, %p85
    %s88 = sadd.s32 %s87, 1
    %p91 = scmp.eq.s32.totalorder %s11, 1
    %p92 = scmp.ne.s32.totalorder %s87, %s89
    %p93 = scmp.eq.s32.totalorder %s11, 0
    %p94 = por %p92, %p93
    %p95 = scmp.ne.s32.totalorder %s87, %s89
    %p96 = scmp.eq.s32.totalorder %s16, 1
    %p97 = por %p95, %p96
    %p98 = scmp.ne.s32.totalorder %s89, %s90
    %p99 = scmp.eq.s32.totalorder %s16, 0
    %p100 = por %p98, %p99
    %p101 = scmp.ne.s32.totalorder %s89, %s90
    %p102 = scmp.eq.s32.totalorder %s17, 1
    %p103 = por %p101, %p102
    %p105 = scmp.ne.s32.totalorder %s90, %s104
    %p106 = scmp.eq.s32.totalorder %s17, 0
    %p107 = por %p105, %p106
    %s109 = sadd.s32 %s108, 1
    %p112 = scmp.eq.s32.totalorder %s11, 1
    %p113 = scmp.ne.s32.totalorder %s108, %s110
    %p114 = scmp.eq.s32.totalorder %s11, 0
    %p115 = por %p113, %p114
    %p116 = scmp.ne.s32.totalorder %s108, %s110
    %p117 = scmp.eq.s32.totalorder %s16, 1
    %p118 = por %p116, %p117
    %p119 = scmp.ne.s32.totalorder %s110, %s111
    %p120 = scmp.eq.s32.totalorder %s16, 0
    %p121 = por %p119, %p120
    %p122 = scmp.ne.s32.totalorder %s110, %s111
    %p123 = scmp.eq.s32.totalorder %s17, 1
    %p124 = por %p122, %p123
    %p126 = scmp.ne.s32.totalorder %s111, %s125
    %p127 = scmp.eq.s32.totalorder %s17, 0
    %p128 = por %p126, %p127
    %s129 = ssub.s32 %s11, %s18
    %p130 = scmp.eq.s32.totalorder %s129, 0
    %s132 = sadd.s32 %s131, 1
    %s133 = scalar_select %p130, %s131, %s132
    %p136 = pneg %p130
    %p137 = scmp.eq.s32.totalorder %s11, 1
    %p138 = por %p136, %p137
    %p139 = scmp.ne.s32.totalorder %s131, %s134
    %p140 = scmp.eq.s32.totalorder %s11, 0
    %p141 = por %p139, %p140
    %p142 = scmp.ne.s32.totalorder %s131, %s134
    %p143 = scmp.eq.s32.totalorder %s16, 1
    %p144 = por %p142, %p143
    %p145 = scmp.ne.s32.totalorder %s134, %s135
    %p146 = scmp.eq.s32.totalorder %s16, 0
    %p147 = por %p145, %p146
    %p148 = scmp.ne.s32.totalorder %s134, %s135
    %p149 = scmp.eq.s32.totalorder %s17, 1
    %p150 = por %p148, %p149
    %p152 = scmp.ne.s32.totalorder %s135, %s151
    %p153 = scmp.eq.s32.totalorder %s17, 0
    %p154 = por %p152, %p153
    %p155 = scmp.le.s32.totalorder 1, %s11
    %p156 = scmp.lt.s32.totalorder %s11, 3
    %p157 = pnand %p155, %p156
    %p158 = pneg %p157
    // Predicated region
    $region9: #{double_conv_pallas.1} parent=5 // pred_check
      _
    $region10: #{double_conv_pallas.1} parent=5 // pred_check_branch
      %160 = sbr.rel (%p157) target = $region12
    $region11: #{double_conv_pallas.1} parent=5 // pred_region
      %s161 = ssub.s32 %s11, 1
      // Predicated region
      $region13: #{double_conv_pallas.1} parent=11 // pred_check
        %p162 = pneg %p58
      $region14: #{double_conv_pallas.1} parent=11 // pred_check_branch
        %164 = sbr.rel (%p162) target = $region16
      $region15: #{double_conv_pallas.1} parent=11 // pred_region
        _
      $region16: #{double_conv_pallas.1} parent=11 // pred_fallthru
        _
      // Predicated region
      $region17: #{double_conv_pallas.1} parent=11 // pred_check
        %p165 = pneg %p79
      $region18: #{double_conv_pallas.1} parent=11 // pred_check_branch
        %167 = sbr.rel (%p165) target = $region20
      $region19: #{double_conv_pallas.1} parent=11 // pred_region
        _
      $region20: #{double_conv_pallas.1} parent=11 // pred_fallthru
        _
      // Predicated region
      $region21: #{double_conv_pallas.1} parent=11 // pred_check
        %p168 = pneg %p100
      $region22: #{double_conv_pallas.1} parent=11 // pred_check_branch
        %170 = sbr.rel (%p168) target = $region24
      $region23: #{double_conv_pallas.1} parent=11 // pred_region
        _
      $region24: #{double_conv_pallas.1} parent=11 // pred_fallthru
        _
      // Predicated region
      $region25: #{double_conv_pallas.1} parent=11 // pred_check
        %p171 = pneg %p121
      $region26: #{double_conv_pallas.1} parent=11 // pred_check_branch
        %173 = sbr.rel (%p171) target = $region28
      $region27: #{double_conv_pallas.1} parent=11 // pred_region
        _
      $region28: #{double_conv_pallas.1} parent=11 // pred_fallthru
        _
    $region12: #{double_conv_pallas.1} parent=5 // pred_fallthru
      _
    %p174 = scmp.lt.s32.totalorder %s11, 2
    // Predicated region
    $region29: #{double_conv_pallas.1} parent=5 // pred_check
      %p175 = pneg %p174
    $region30: #{double_conv_pallas.1} parent=5 // pred_check_branch
      %177 = sbr.rel (%p175) target = $region32
    $region31: #{double_conv_pallas.1} parent=5 // pred_region
      // Predicated region
      $region33: #{double_conv_pallas.1} parent=31 // pred_check
        %p178 = pneg %p31
      $region34: #{double_conv_pallas.1} parent=31 // pred_check_branch
        %180 = sbr.rel (%p178) target = $region36
      $region35: #{double_conv_pallas.1} parent=31 // pred_region
        %p181 = scmp.lt.s32.totalorder %s11, 1
        %s182 = scalar_select %p181, %s11, 1
        %s183 = smul.addr %s182, 2
        %s184 = smul.addr %s183, 4
        %s185 = scalar_lea.vmem %s0, %s184
      $region36: #{double_conv_pallas.1} parent=31 // pred_fallthru
        _
    $region32: #{double_conv_pallas.1} parent=5 // pred_fallthru
      _
    %p186 = scmp.le.s32.totalorder 1, %s11
    %p187 = scmp.lt.s32.totalorder %s11, 3
    %p188 = pnand %p186, %p187
    %p189 = pneg %p188
    // Predicated region
    $region37: #{double_conv_pallas.1} parent=5 // pred_check
      _
    $region38: #{double_conv_pallas.1} parent=5 // pred_check_branch
      %191 = sbr.rel (%p188) target = $region40
    $region39: #{double_conv_pallas.1} parent=5 // pred_region
      %s192 = ssub.s32 %s11, 1
      %p193 = scmp.lt.s32.totalorder %s16, 1
      %s194 = scalar_select %p193, %s16, 1
      %s195 = smul.addr %s194, 2
      %s196 = smul.addr %s195, 4
      %s197 = scalar_lea.vmem %s0, %s196
      %p198 = pneg %p37
      %p199 = pneg %p34
      %p200 = pneg %p58
      %p201 = pneg %p55
      %p202 = pneg %p79
      %p203 = pneg %p76
      %p204 = pneg %p100
      %p205 = pneg %p97
      %p206 = pneg %p121
      %p207 = pneg %p118
      %p208 = pneg %p147
      %p209 = pneg %p144
      %p210 = scmp.lt.s32.totalorder %s16, 1
      %s211 = scalar_select %p210, %s16, 1
      %s212 = smul.addr %s211, 2
      %s213 = smul.addr %s212, 4
      %s214 = scalar_lea.vmem %s5, %s213
      %p215 = scmp.lt.s32.totalorder %s16, 1
      %s216 = scalar_select %p215, %s16, 1
      %s217 = smul.addr %s216, 2
      %s218 = smul.addr %s217, 4
      %s219 = scalar_lea.vmem %s0, %s218
      %p220 = scmp.lt.s32.totalorder %s16, 1
      %s221 = scalar_select %p220, %s16, 1
      %s222 = smul.addr %s221, 2
      %s223 = smul.addr %s222, 4
      %s224 = scalar_lea.vmem %s5, %s223
      %v226 = vld [vmem:[%s219] sm:$0xf]
      %v227 = vld [vmem:[%s219 + $0x4] sm:$0xf]
      %v230 = vunpack.c.l.b16 %v226
      %v231 = vunpack.c.l.b16 %v227
      %v232 = vpack.c.b16 %v231, %v230
      %v234 = vshrl.u32 %v232, 16
      %v236 = vrot.slane %v234, 7
      %v237 = vshll.u32 %v232, 16
      %v239 = vor.u32 %v236, %v237
      %vm241 = vcmask 1040384
      %vm242 = vsmask.f32 256
      %vm243 = vmand %vm241, %vm242
      %v244 = vsel %vm243, 0, %v239
      %v245 = vrot.slane %v237, 1
      %v246 = vor.u32 %v234, %v245
      %vm248 = vcmask 1047552
      %vm249 = vsmask.f32 7424
      %vm250 = vmand %vm248, %vm249
      %v251 = vsel %vm250, %v246, 0
      %252 = vrot.lane.b32.xlu0 %v232, 64
      %v253 = vpop.permute.xlu0 %252
      %vm254 = vcmask 523264
      %v257 = vsel %vm254, %v244, %v253
      %v259 = vld [vmem:[%s1] sm:$0xff]
      %v260 = vld [vmem:[%s1 + $0x8] sm:$0xff]
      %v261 = vld [vmem:[%s1 + $0x10] sm:$0xff]
      %v262 = vld [vmem:[%s1 + $0x18] sm:$0xff]
      %v263 = vld [vmem:[%s1 + $0x20] sm:$0xff]
      %v264 = vld [vmem:[%s1 + $0x28] sm:$0xff]
      %v265 = vld [vmem:[%s1 + $0x30] sm:$0xff]
      %v266 = vld [vmem:[%s1 + $0x38] sm:$0xff]
      %v267 = vld [vmem:[%s1 + $0x40] sm:$0xff]
      %v268 = vld [vmem:[%s1 + $0x48] sm:$0xff]
      %v269 = vld [vmem:[%s1 + $0x50] sm:$0xff]
      %v270 = vld [vmem:[%s1 + $0x58] sm:$0xff]
      %v271 = vld [vmem:[%s1 + $0x60] sm:$0xff]
      %v272 = vld [vmem:[%s1 + $0x68] sm:$0xff]
      %v273 = vld [vmem:[%s1 + $0x70] sm:$0xff]
      %v274 = vld [vmem:[%s1 + $0x78] sm:$0xff]
      %v275 = vld [vmem:[%s1 + $0x80] sm:$0xff]
      %v276 = vld [vmem:[%s1 + $0x88] sm:$0xff]
      %v277 = vld [vmem:[%s1 + $0x90] sm:$0xff]
      %v278 = vld [vmem:[%s1 + $0x98] sm:$0xff]
      %v279 = vld [vmem:[%s1 + $0xa0] sm:$0xff]
      %v280 = vld [vmem:[%s1 + $0xa8] sm:$0xff]
      %v281 = vld [vmem:[%s1 + $0xb0] sm:$0xff]
      %v282 = vld [vmem:[%s1 + $0xb8] sm:$0xff]
      %v283 = vld [vmem:[%s2] sm:$0x3]
      %v285 = vlaneseq
      %v286 = vshrl.u32 %v285, 7
      %v287 = vsub.s32 0, %v286
      %v288 = vrot.slane %v283, %v287
      %v289 = vlaneseq
      %v290 = vshrl.u32 %v289, 7
      %v291 = vsub.s32 1, %v290
      %v292 = vrot.slane %v283, %v291
      %v319 = vunpack.c.l.b16 %v259
      %v320 = vunpack.c.h.b16 %v259
      %v321 = vunpack.c.l.b16 %v260
      %v322 = vunpack.c.h.b16 %v260
      %v323 = vunpack.c.l.b16 %v261
      %v324 = vunpack.c.h.b16 %v261
      %v325 = vunpack.c.l.b16 %v262
      %v326 = vunpack.c.h.b16 %v262
      %v327 = vunpack.c.l.b16 %v263
      %v328 = vunpack.c.h.b16 %v263
      %v329 = vunpack.c.l.b16 %v264
      %v330 = vunpack.c.h.b16 %v264
      %v331 = vunpack.c.l.b16 %v265
      %v332 = vunpack.c.h.b16 %v265
      %v333 = vunpack.c.l.b16 %v266
      %v334 = vunpack.c.h.b16 %v266
      %v335 = vunpack.c.l.b16 %v267
      %v336 = vunpack.c.h.b16 %v267
      %v337 = vunpack.c.l.b16 %v268
      %v338 = vunpack.c.h.b16 %v268
      %v339 = vunpack.c.l.b16 %v269
      %v340 = vunpack.c.h.b16 %v269
      %v341 = vunpack.c.l.b16 %v270
      %v342 = vunpack.c.h.b16 %v270
      %v343 = vunpack.c.l.b16 %v271
      %v344 = vunpack.c.h.b16 %v271
      %v345 = vunpack.c.l.b16 %v272
      %v346 = vunpack.c.h.b16 %v272
      %v347 = vunpack.c.l.b16 %v273
      %v348 = vunpack.c.h.b16 %v273
      %v349 = vunpack.c.l.b16 %v274
      %v350 = vunpack.c.h.b16 %v274
      %v351 = vunpack.c.l.b16 %v275
      %v352 = vunpack.c.h.b16 %v275
      %v353 = vunpack.c.l.b16 %v276
      %v354 = vunpack.c.h.b16 %v276
      %v355 = vunpack.c.l.b16 %v277
      %v356 = vunpack.c.h.b16 %v277
      %v357 = vunpack.c.l.b16 %v278
      %v358 = vunpack.c.h.b16 %v278
      %v359 = vunpack.c.l.b16 %v279
      %v360 = vunpack.c.h.b16 %v279
      %v361 = vunpack.c.l.b16 %v280
      %v362 = vunpack.c.h.b16 %v280
      %v363 = vunpack.c.l.b16 %v281
      %v364 = vunpack.c.h.b16 %v281
      %v365 = vunpack.c.l.b16 %v282
      %v366 = vunpack.c.h.b16 %v282
      %v367 = vpack.c.b16 %v321, %v319
      %v368 = vpack.c.b16 %v322, %v320
      %v369 = vpack.c.b16 %v325, %v323
      %v370 = vpack.c.b16 %v326, %v324
      %v371 = vpack.c.b16 %v329, %v327
      %v372 = vpack.c.b16 %v330, %v328
      %v373 = vpack.c.b16 %v333, %v331
      %v374 = vpack.c.b16 %v334, %v332
      %v375 = vpack.c.b16 %v337, %v335
      %v376 = vpack.c.b16 %v338, %v336
      %v377 = vpack.c.b16 %v341, %v339
      %v378 = vpack.c.b16 %v342, %v340
      %v379 = vpack.c.b16 %v345, %v343
      %v380 = vpack.c.b16 %v346, %v344
      %v381 = vpack.c.b16 %v349, %v347
      %v382 = vpack.c.b16 %v350, %v348
      %v383 = vpack.c.b16 %v353, %v351
      %v384 = vpack.c.b16 %v354, %v352
      %v385 = vpack.c.b16 %v357, %v355
      %v386 = vpack.c.b16 %v358, %v356
      %v387 = vpack.c.b16 %v361, %v359
      %v388 = vpack.c.b16 %v362, %v360
      %v389 = vpack.c.b16 %v365, %v363
      %v390 = vpack.c.b16 %v366, %v364
      %v416 = vsel %vm254, %v251, 0
      %418 = vmatprep.subr.bf16.mxu0 %v368
      %419 = vmatpush1.bf16.msra.mxu0 %v367
      %420 = vmatprep.subr.bf16.mxu0 %v370
      %421 = vmatpush1.bf16.msra.mxu0 %v369
      %422 = vmatprep.subr.bf16.mxu0 %v372
      %423 = vmatpush1.bf16.msra.mxu0 %v371
      %424 = vmatprep.subr.bf16.mxu0 %v374
      %425 = vmatpush1.bf16.msra.mxu0 %v373
      %426 = vmatprep.subr.bf16.mxu0 %v376
      %427 = vmatpush1.bf16.msra.mxu0 %v375
      %428 = vmatprep.subr.bf16.mxu0 %v378
      %429 = vmatpush1.bf16.msra.mxu0 %v377
      %430 = vmatprep.subr.bf16.mxu0 %v380
      %431 = vmatpush1.bf16.msra.mxu0 %v379
      %432 = vmatprep.subr.bf16.mxu0 %v382
      %433 = vmatpush1.bf16.msra.mxu0 %v381
      %434 = vmatprep.subr.bf16.mxu0 %v384
      %435 = vmatpush1.bf16.msra.mxu0 %v383
      %436 = vmatprep.subr.bf16.mxu0 %v386
      %437 = vmatpush1.bf16.msra.mxu0 %v385
      %438 = vmatprep.subr.bf16.mxu0 %v388
      %439 = vmatpush1.bf16.msra.mxu0 %v387
      %440 = vmatprep.subr.bf16.mxu0 %v390
      %441 = vmatpush1.bf16.msra.mxu0 %v389
      %442 = vmatprep.subr.bf16.mxu0 0
      %443 = vmatpush1.bf16.msra.mxu0 0
      %444 = vmatprep.subr.bf16.mxu0 0
      %445 = vmatpush1.bf16.msra.mxu0 0
      %446 = vmatprep.subr.bf16.mxu0 0
      %447 = vmatpush1.bf16.msra.mxu0 0
      %448 = vmatprep.subr.bf16.mxu0 0
      %449 = vmatpush1.bf16.msra.mxu0 0
      %450 = vmatprep.mubr.bf16.mxu0 %v416
      %451 = vmatmul.mubr.bf16.gmra.mrb[0].mxu0 %v257
      %v452 = vpop.f32.mrb[0].mxu0
      %v453 = vadd.f32 %v288, %v452
      %v454 = vpop.f32.mrb[0].mxu0
      %v455 = vadd.f32 %v292, %v454
      %v456 = vpop.f32.mrb[0].mxu0
      %v457 = vadd.f32 %v288, %v456
      %v458 = vpop.f32.mrb[0].mxu0
      %v459 = vadd.f32 %v292, %v458
      %460 = vdwg.mxu0
      %v461 = vmax.f32 %v453, 0.0
      %v462 = vmax.f32 %v457, 0.0
      %v463 = vpack.c.bf16 %v462, %v461
      %v465 = vshrl.u32 %v463, 16
      %v467 = vrot.slane %v465, 7
      %v468 = vshll.u32 %v463, 16
      %v470 = vor.u32 %v467, %v468
      %v472 = vsel %vm243, 0, %v470
      %v473 = vrot.slane %v468, 1
      %v474 = vor.u32 %v465, %v473
      %v476 = vsel %vm250, %v474, 0
      %v477 = vld [vmem:[%s3] sm:$0xf]
      %v478 = vld [vmem:[%s3 + $0x4] sm:$0xf]
      %v479 = vld [vmem:[%s3 + $0x8] sm:$0xf]
      %v480 = vld [vmem:[%s3 + $0xc] sm:$0xf]
      %v481 = vld [vmem:[%s3 + $0x10] sm:$0xf]
      %v482 = vld [vmem:[%s3 + $0x14] sm:$0xf]
      %v483 = vld [vmem:[%s3 + $0x18] sm:$0xf]
      %v484 = vld [vmem:[%s3 + $0x1c] sm:$0xf]
      %v485 = vld [vmem:[%s3 + $0x20] sm:$0xf]
      %v486 = vld [vmem:[%s3 + $0x24] sm:$0xf]
      %v487 = vld [vmem:[%s3 + $0x28] sm:$0xf]
      %v488 = vld [vmem:[%s3 + $0x2c] sm:$0xf]
      %v489 = vld [vmem:[%s3 + $0x30] sm:$0xf]
      %v490 = vld [vmem:[%s3 + $0x34] sm:$0xf]
      %v491 = vld [vmem:[%s3 + $0x38] sm:$0xf]
      %v492 = vld [vmem:[%s3 + $0x3c] sm:$0xf]
      %v493 = vld [vmem:[%s3 + $0x40] sm:$0xf]
      %v494 = vld [vmem:[%s3 + $0x44] sm:$0xf]
      %v495 = vld [vmem:[%s3 + $0x48] sm:$0xf]
      %v496 = vld [vmem:[%s3 + $0x4c] sm:$0xf]
      %v497 = vld [vmem:[%s3 + $0x50] sm:$0xf]
      %v498 = vld [vmem:[%s3 + $0x54] sm:$0xf]
      %v499 = vld [vmem:[%s3 + $0x58] sm:$0xf]
      %v500 = vld [vmem:[%s3 + $0x5c] sm:$0xf]
      %v501 = vld [vmem:[%s3 + $0x60] sm:$0xf]
      %v502 = vld [vmem:[%s3 + $0x64] sm:$0xf]
      %v503 = vld [vmem:[%s3 + $0x68] sm:$0xf]
      %v504 = vld [vmem:[%s3 + $0x6c] sm:$0xf]
      %v505 = vld [vmem:[%s3 + $0x70] sm:$0xf]
      %v506 = vld [vmem:[%s3 + $0x74] sm:$0xf]
      %v507 = vld [vmem:[%s3 + $0x78] sm:$0xf]
      %v508 = vld [vmem:[%s3 + $0x7c] sm:$0xf]
      %v509 = vld [vmem:[%s3 + $0x80] sm:$0xf]
      %v510 = vld [vmem:[%s3 + $0x84] sm:$0xf]
      %v511 = vld [vmem:[%s3 + $0x88] sm:$0xf]
      %v512 = vld [vmem:[%s3 + $0x8c] sm:$0xf]
      %v513 = vld [vmem:[%s3 + $0x90] sm:$0xf]
      %v514 = vld [vmem:[%s3 + $0x94] sm:$0xf]
      %v515 = vld [vmem:[%s3 + $0x98] sm:$0xf]
      %v516 = vld [vmem:[%s3 + $0x9c] sm:$0xf]
      %v517 = vld [vmem:[%s3 + $0xa0] sm:$0xf]
      %v518 = vld [vmem:[%s3 + $0xa4] sm:$0xf]
      %v519 = vld [vmem:[%s3 + $0xa8] sm:$0xf]
      %v520 = vld [vmem:[%s3 + $0xac] sm:$0xf]
      %v521 = vld [vmem:[%s3 + $0xb0] sm:$0xf]
      %v522 = vld [vmem:[%s3 + $0xb4] sm:$0xf]
      %v523 = vld [vmem:[%s3 + $0xb8] sm:$0xf]
      %v524 = vld [vmem:[%s3 + $0xbc] sm:$0xf]
      %v525 = vld [vmem:[%s4] sm:$0x1]
      %v527 = vlaneseq
      %v528 = vshrl.u32 %v527, 7
      %v529 = vsub.s32 0, %v528
      %v530 = vrot.slane %v525, %v529
      %v580 = vunpack.c.l.b16 %v477
      %v581 = vunpack.c.l.b16 %v478
      %v582 = vunpack.c.l.b16 %v479
      %v583 = vunpack.c.l.b16 %v480
      %v584 = vunpack.c.l.b16 %v481
      %v585 = vunpack.c.l.b16 %v482
      %v586 = vunpack.c.l.b16 %v483
      %v587 = vunpack.c.l.b16 %v484
      %v588 = vunpack.c.l.b16 %v485
      %v589 = vunpack.c.l.b16 %v486
      %v590 = vunpack.c.l.b16 %v487
      %v591 = vunpack.c.l.b16 %v488
      %v592 = vunpack.c.l.b16 %v489
      %v593 = vunpack.c.l.b16 %v490
      %v594 = vunpack.c.l.b16 %v491
      %v595 = vunpack.c.l.b16 %v492
      %v596 = vunpack.c.l.b16 %v493
      %v597 = vunpack.c.l.b16 %v494
      %v598 = vunpack.c.l.b16 %v495
      %v599 = vunpack.c.l.b16 %v496
      %v600 = vunpack.c.l.b16 %v497
      %v601 = vunpack.c.l.b16 %v498
      %v602 = vunpack.c.l.b16 %v499
      %v603 = vunpack.c.l.b16 %v500
      %v604 = vunpack.c.l.b16 %v501
      %v605 = vunpack.c.l.b16 %v502
      %v606 = vunpack.c.l.b16 %v503
      %v607 = vunpack.c.l.b16 %v504
      %v608 = vunpack.c.l.b16 %v505
      %v609 = vunpack.c.l.b16 %v506
      %v610 = vunpack.c.l.b16 %v507
      %v611 = vunpack.c.l.b16 %v508
      %v612 = vunpack.c.l.b16 %v509
      %v613 = vunpack.c.l.b16 %v510
      %v614 = vunpack.c.l.b16 %v511
      %v615 = vunpack.c.l.b16 %v512
      %v616 = vunpack.c.l.b16 %v513
      %v617 = vunpack.c.l.b16 %v514
      %v618 = vunpack.c.l.b16 %v515
      %v619 = vunpack.c.l.b16 %v516
      %v620 = vunpack.c.l.b16 %v517
      %v621 = vunpack.c.l.b16 %v518
      %v622 = vunpack.c.l.b16 %v519
      %v623 = vunpack.c.l.b16 %v520
      %v624 = vunpack.c.l.b16 %v521
      %v625 = vunpack.c.l.b16 %v522
      %v626 = vunpack.c.l.b16 %v523
      %v627 = vunpack.c.l.b16 %v524
      %v628 = vpack.c.b16 %v581, %v580
      %v629 = vpack.c.b16 %v583, %v582
      %v630 = vpack.c.b16 %v585, %v584
      %v631 = vpack.c.b16 %v587, %v586
      %v632 = vpack.c.b16 %v589, %v588
      %v633 = vpack.c.b16 %v591, %v590
      %v634 = vpack.c.b16 %v593, %v592
      %v635 = vpack.c.b16 %v595, %v594
      %v636 = vpack.c.b16 %v597, %v596
      %v637 = vpack.c.b16 %v599, %v598
      %v638 = vpack.c.b16 %v601, %v600
      %v639 = vpack.c.b16 %v603, %v602
      %v640 = vpack.c.b16 %v605, %v604
      %v641 = vpack.c.b16 %v607, %v606
      %v642 = vpack.c.b16 %v609, %v608
      %v643 = vpack.c.b16 %v611, %v610
      %v644 = vpack.c.b16 %v613, %v612
      %v645 = vpack.c.b16 %v615, %v614
      %v646 = vpack.c.b16 %v617, %v616
      %v647 = vpack.c.b16 %v619, %v618
      %v648 = vpack.c.b16 %v621, %v620
      %v649 = vpack.c.b16 %v623, %v622
      %v650 = vpack.c.b16 %v625, %v624
      %v651 = vpack.c.b16 %v627, %v626
      %676 = vmatprep.subr.bf16.mxu0 0
      %677 = vmatpush1.bf16.msra.mxu0 %v628
      %678 = vmatprep.subr.bf16.mxu0 0
      %679 = vmatpush1.bf16.msra.mxu0 %v629
      %680 = vmatprep.subr.bf16.mxu0 0
      %681 = vmatpush1.bf16.msra.mxu0 %v630
      %682 = vmatprep.subr.bf16.mxu0 0
      %683 = vmatpush1.bf16.msra.mxu0 %v631
      %684 = vmatprep.subr.bf16.mxu0 0
      %685 = vmatpush1.bf16.msra.mxu0 %v632
      %686 = vmatprep.subr.bf16.mxu0 0
      %687 = vmatpush1.bf16.msra.mxu0 %v633
      %688 = vmatprep.subr.bf16.mxu0 0
      %689 = vmatpush1.bf16.msra.mxu0 %v634
      %690 = vmatprep.subr.bf16.mxu0 0
      %691 = vmatpush1.bf16.msra.mxu0 %v635
      %692 = vmatprep.subr.bf16.mxu0 0
      %693 = vmatpush1.bf16.msra.mxu0 %v636
      %694 = vmatprep.subr.bf16.mxu0 0
      %695 = vmatpush1.bf16.msra.mxu0 %v637
      %696 = vmatprep.subr.bf16.mxu0 0
      %697 = vmatpush1.bf16.msra.mxu0 %v638
      %698 = vmatprep.subr.bf16.mxu0 0
      %699 = vmatpush1.bf16.msra.mxu0 %v639
      %700 = vmatprep.subr.bf16.mxu0 0
      %701 = vmatpush1.bf16.msra.mxu0 %v640
      %702 = vmatprep.subr.bf16.mxu0 0
      %703 = vmatpush1.bf16.msra.mxu0 %v641
      %704 = vmatprep.subr.bf16.mxu0 0
      %705 = vmatpush1.bf16.msra.mxu0 %v642
      %706 = vmatprep.subr.bf16.mxu0 0
      %707 = vmatpush1.bf16.msra.mxu0 %v643
      %708 = vmatprep.mubr.bf16.mxu0 %v463
      %709 = vmatmul.mubr.bf16.gmra.mrb[0].mxu0 %v472
      %v710 = vpop.f32.mrb[0].mxu0
      %v711 = vadd.f32 %v530, %v710
      %v712 = vpop.f32.mrb[0].mxu0
      %v713 = vpop.f32.mrb[0].mxu0
      %v714 = vadd.f32 %v530, %v713
      %v715 = vpop.f32.mrb[0].mxu0
      %716 = vdwg.mxu0
      %717 = vmatprep.subr.bf16.mxu0 0
      %718 = vmatpush1.bf16.msra.mxu0 %v644
      %719 = vmatprep.subr.bf16.mxu0 0
      %720 = vmatpush1.bf16.msra.mxu0 %v645
      %721 = vmatprep.subr.bf16.mxu0 0
      %722 = vmatpush1.bf16.msra.mxu0 %v646
      %723 = vmatprep.subr.bf16.mxu0 0
      %724 = vmatpush1.bf16.msra.mxu0 %v647
      %725 = vmatprep.subr.bf16.mxu0 0
      %726 = vmatpush1.bf16.msra.mxu0 %v648
      %727 = vmatprep.subr.bf16.mxu0 0
      %728 = vmatpush1.bf16.msra.mxu0 %v649
      %729 = vmatprep.subr.bf16.mxu0 0
      %730 = vmatpush1.bf16.msra.mxu0 %v650
      %731 = vmatprep.subr.bf16.mxu0 0
      %732 = vmatpush1.bf16.msra.mxu0 %v651
      %733 = vmatprep.subr.bf16.mxu0 0
      %734 = vmatpush1.bf16.msra.mxu0 0
      %735 = vmatprep.subr.bf16.mxu0 0
      %736 = vmatpush1.bf16.msra.mxu0 0
      %737 = vmatprep.subr.bf16.mxu0 0
      %738 = vmatpush1.bf16.msra.mxu0 0
      %739 = vmatprep.subr.bf16.mxu0 0
      %740 = vmatpush1.bf16.msra.mxu0 0
      %741 = vmatprep.subr.bf16.mxu0 0
      %742 = vmatpush1.bf16.msra.mxu0 0
      %743 = vmatprep.subr.bf16.mxu0 0
      %744 = vmatpush1.bf16.msra.mxu0 0
      %745 = vmatprep.subr.bf16.mxu0 0
      %746 = vmatpush1.bf16.msra.mxu0 0
      %747 = vmatprep.subr.bf16.mxu0 0
      %748 = vmatpush1.bf16.msra.mxu0 0
      %749 = vmatprep.mubr.bf16.mxu0 0
      %750 = vmatmul.mubr.bf16.gmra.mrb[0].mxu0 %v476
      %v751 = vpop.f32.mrb[0].mxu0
      %v752 = vadd.f32 %v711, %v751
      %v753 = vpop.f32.mrb[0].mxu0
      %v754 = vpop.f32.mrb[0].mxu0
      %v755 = vadd.f32 %v714, %v754
      %v756 = vpop.f32.mrb[0].mxu0
      %757 = vdwg.mxu0
      %v758 = vadd.f32 %v752, %v455
      %v759 = vadd.f32 %v755, %v459
      %v760 = vmax.f32 %v758, 0.0
      %v761 = vmax.f32 %v759, 0.0
      %v762 = vpack.c.bf16 %v761, %v760
      %v764 = vunpack.c.l.b16 %v762
      %v765 = vunpack.c.h.b16 %v762
      %v766 = vpack.c.b16 %v764, %v764
      %v767 = vpack.c.b16 %v765, %v765
      %770 = vst [vmem:[%s224] sm:$0xf] %v766
      %771 = vst [vmem:[%s224 + $0x4] sm:$0xf] %v767
      %p772 = scmp.lt.s32.totalorder %s16, 1
      %s773 = scalar_select %p772, %s16, 1
      %s774 = smul.addr %s773, 2
      %s775 = smul.addr %s774, 4
      %s776 = scalar_lea.vmem %s5, %s775
      // Predicated region
      $region41: #{double_conv_pallas.1} parent=39 // pred_check
        %p777 = pneg %p144
      $region42: #{double_conv_pallas.1} parent=39 // pred_check_branch
        %779 = sbr.rel (%p777) target = $region44
      $region43: #{double_conv_pallas.1} parent=39 // pred_region
        _
      $region44: #{double_conv_pallas.1} parent=39 // pred_fallthru
        _
    $region40: #{double_conv_pallas.1} parent=5 // pred_fallthru
      _
    %p780 = scmp.le.s32.totalorder 2, %s11
    // Predicated region
    $region45: #{double_conv_pallas.1} parent=5 // pred_check
      %p781 = pneg %p780
    $region46: #{double_conv_pallas.1} parent=5 // pred_check_branch
      %783 = sbr.rel (%p781) target = $region48
    $region47: #{double_conv_pallas.1} parent=5 // pred_region
      %s784 = ssub.s32 %s11, 2
      // Predicated region
      $region49: #{double_conv_pallas.1} parent=47 // pred_check
        %p785 = pneg %p150
      $region50: #{double_conv_pallas.1} parent=47 // pred_check_branch
        %787 = sbr.rel (%p785) target = $region52
      $region51: #{double_conv_pallas.1} parent=47 // pred_region
        %p788 = scmp.lt.s32.totalorder %s17, 1
        %s789 = scalar_select %p788, %s17, 1
        %s790 = smul.addr %s789, 2
        %s791 = smul.addr %s790, 4
        %s792 = scalar_lea.vmem %s5, %s791
      $region52: #{double_conv_pallas.1} parent=47 // pred_fallthru
        _
    $region48: #{double_conv_pallas.1} parent=5 // pred_fallthru
      _
  $region6: #{double_conv_pallas.1} parent=0 // loop_footer
    %s15 = sadd.s32 1, %s11
  $region7: #{double_conv_pallas.1} parent=0 // loop_footer_branch
    %10 = sbr.rel target = $region3
  $region8: #{double_conv_pallas.1} parent=0 // loop_exit
    _

</llo_original>
